<compile_context>
chip_gen: v6e
topology: v6e:2x2x1
jax: 0.10.0
libtpu: 0.0.40
codegen_flags: <defaults>
</compile_context>

<pallas_src>
import functools

import jax
import jax.numpy as jnp
from jax.experimental import pallas as pl
from jax.experimental.pallas import tpu as pltpu

_LANE = 128
_SUB = 8
_TILE_ELEMS = _SUB * _LANE            # 1024 = one (8,128) f32 vreg worth of elements


def _round_down(x, m):
    return (x // m) * m


@functools.lru_cache(maxsize=None)
def _vmem_limit_bytes():
    """Generation-aware scoped-VMEM request (physical capacity minus headroom)."""
    try:
        cap = int(pltpu.get_tpu_info().vmem_capacity_bytes)
    except Exception:
        cap = 64 << 20                                      # conservative (v7x-sized)
    # v7x (64 MiB) -> 48 MiB, v5e/v6e (128 MiB) -> 64 MiB; never below 32 MiB.
    return max(32 << 20, min(cap - (16 << 20), 64 << 20))


@functools.lru_cache(maxsize=None)
def _num_tensorcores():
    """Best-effort TensorCore count for the megacore split; unknown -> 2
    (a size-2 parallel grid axis is near-free on single-core chips)."""
    try:
        info = pltpu.get_tpu_info()
        for attr in ("num_cores", "core_count", "num_tensorcores", "tensorcore_count"):
            v = getattr(info, attr, None)
            if v:
                try:
                    v = int(v)
                except Exception:
                    continue
                if v > 0:
                    return min(v, 8)
    except Exception:
        pass
    return 2


def _max_tile_bytes(n_buffered):
    """Per-array per-block byte budget given the number of double-buffered arrays."""
    limit = _vmem_limit_bytes()
    cap = (8 << 20) if limit >= (64 << 20) else (4 << 20)   # bigger tiles on 128-MiB parts
    return min(cap, (limit // 2) // (n_buffered * 2))


def _elem_loss(pred, tgt, *, beta, eps, approx_recip=False):
    """Element-wise symmetric relative smooth-L1 loss (f32 math)."""
    diff = pred - tgt
    adiff = jnp.abs(diff)
    half_over_beta = (0.5 / beta) if beta > 0.0 else 0.0    # compile-time constant
    quad = (half_over_beta * diff) * diff
    lin = adiff - 0.5 * beta
    smooth_l1 = jnp.where(adiff < beta, quad, lin)
    denom = jnp.maximum(jnp.maximum(jnp.abs(pred), jnp.abs(tgt)), eps)
    if approx_recip:
        # EUP approximate reciprocal: moves work off the VALU where it binds.
        return smooth_l1 * pl.reciprocal(denom, approx=True)
    return smooth_l1 / denom


def _none_kernel(pred_ref, tgt_ref, out_ref, *, beta, eps, approx_recip):
    # Shared by the (block_rows, 128) slab path and the flat 1-D ragged path.
    # On a partial last block the loss is computed on undefined (out-of-bounds)
    # data; that is safe on TPU (no fp traps) and Pallas discards the
    # corresponding out-of-bounds output writes.
    pred = pred_ref[...].astype(jnp.float32)
    tgt = tgt_ref[...].astype(jnp.float32)
    out_ref[...] = _elem_loss(pred, tgt, beta=beta, eps=eps,
                              approx_recip=approx_recip).astype(out_ref.dtype)


def _sum_kernel_slab(pred_ref, tgt_ref, acc_ref, *, beta, eps, nb, bps,
                     block_rows, rows_in_last, approx_recip):
    """(rows, 128) slab reduction: accumulate per-lane partial sums into a
    resident (8, 128) f32 block; only the last (partial) block is masked."""
    s = pl.program_id(0)          # split (parallel)
    k = pl.program_id(1)          # block within split (arbitrary / reduction)
    g = s * bps + k               # global block index

    @pl.when(k == 0)
    def _init():
        acc_ref[...] = jnp.zeros_like(acc_ref)

    def _accumulate(mask_rows):
        pred = pred_ref[...].astype(jnp.float32)
        tgt = tgt_ref[...].astype(jnp.float32)
        loss = _elem_loss(pred, tgt, beta=beta, eps=eps, approx_recip=approx_recip)
        if mask_rows:
            # Only the globally-last block hangs over the slab edge; its
            # out-of-bounds rows hold undefined data and must be zeroed.
            row = jax.lax.broadcasted_iota(jnp.int32, loss.shape, 0)
            loss = jnp.where(row < rows_in_last, loss, 0.0)
        if block_rows % _SUB == 0:
            # Fold rows in groups of 8 -> pure VPU vreg adds, no XLU in the loop.
            acc_ref[...] += loss.reshape(block_rows // _SUB, _SUB, _LANE).sum(axis=0)
        else:
            # Tiny single-block case (rows < 8): one sublane reduce total.
            acc_ref[0:1, :] += jnp.sum(loss, axis=0, keepdims=True)

    if rows_in_last == block_rows:
        @pl.when(g < nb)                      # skip padding blocks of the split grid
        def _():
            _accumulate(False)
    else:
        @pl.when(g < nb - 1)                  # full blocks: no mask
        def _():
            _accumulate(False)

        @pl.when(g == nb - 1)                 # the single partial block: masked
        def _():
            _accumulate(True)


def _sum_kernel_flat(iota_ref, pred_ref, tgt_ref, acc_ref, *, beta, eps, nb, bps,
                     block_elems, valid_in_last, approx_recip):
    """Ragged (n % 128 != 0) zero-copy reduction: flat 1-D blocks, elementwise
    accumulation into a resident (block_elems,) f32 block."""
    s = pl.program_id(0)
    k = pl.program_id(1)
    g = s * bps + k

    @pl.when(k == 0)
    def _init():
        acc_ref[...] = jnp.zeros_like(acc_ref)

    def _accumulate(mask_tail):
        pred = pred_ref[...].astype(jnp.float32)
        tgt = tgt_ref[...].astype(jnp.float32)
        loss = _elem_loss(pred, tgt, beta=beta, eps=eps, approx_recip=approx_recip)
        if mask_tail:
            # Block-local index vector (precomputed input, fetched once):
            # select (not multiply) so garbage NaN/Inf never propagates.
            loss = jnp.where(iota_ref[...] < valid_in_last, loss, 0.0)
        acc_ref[...] += loss

    if valid_in_last == block_elems:
        @pl.when(g < nb)
        def _():
            _accumulate(False)
    else:
        @pl.when(g < nb - 1)
        def _():
            _accumulate(False)

        @pl.when(g == nb - 1)
        def _():
            _accumulate(True)


def _as_slab(x, rows):
    """View x as a (rows, 128) slab; copies only when a <=127-element lane-tail
    pad is required (used only for tiny ragged inputs, n < 1024)."""
    flat = x.reshape(-1)
    pad = rows * _LANE - flat.shape[0]
    if pad:
        flat = jnp.pad(flat, (0, pad))
    return flat.reshape(rows, _LANE)


def _pick_block_rows(rows, itemsize, n_buffered, max_block_elems):
    if max_block_elems is None:
        cap_rows = _max_tile_bytes(n_buffered) // (_LANE * itemsize)
    else:
        cap_rows = max(_SUB, int(max_block_elems) // _LANE)
    cap_rows = max(_SUB, _round_down(int(cap_rows), _SUB))
    if rows <= cap_rows:
        return rows, 1               # single block equal to the full slab (always legal)
    return cap_rows, pl.cdiv(rows, cap_rows)


def _pick_block_elems(n, itemsize, n_buffered, max_block_elems):
    if max_block_elems is None:
        cap = _max_tile_bytes(n_buffered) // itemsize
    else:
        cap = int(max_block_elems)
    cap = max(_TILE_ELEMS, _round_down(cap, _TILE_ELEMS))
    cap = min(cap, _round_down(n, _TILE_ELEMS))  # first block fully in-bounds (n >= 1024)
    return cap, pl.cdiv(n, cap)


def _pick_splits(nb):
    cores = _num_tensorcores()
    if cores > 1 and nb >= 2:
        return min(cores, nb)
    return 1


def symmetric_relative_smooth_l1_loss(prediction, target, *, reduction="mean",
                                      beta=1.0, eps=1e-8, approx_reciprocal=False,
                                      max_block_elems=None):
    if prediction.shape != target.shape:
        raise ValueError("prediction and target must have the same shape")
    if reduction not in ("none", "mean", "sum"):
        raise ValueError(f"Incorrect reduction: {reduction}")

    orig_shape = prediction.shape
    out_dtype = prediction.dtype
    n = prediction.size
    beta = float(beta)
    eps = float(eps)

    if n == 0:
        if reduction == "none":
            return jnp.zeros(orig_shape, out_dtype)
        if reduction == "sum":
            return jnp.zeros((), out_dtype)
        return jnp.full((), jnp.nan, out_dtype)   # mean of empty -> NaN (torch behaviour)

    itemsize = jnp.dtype(prediction.dtype).itemsize
    vmem_limit = _vmem_limit_bytes()
    ragged = (n % _LANE) != 0
    use_flat = ragged and n >= _TILE_ELEMS        # zero-copy flat path for ragged inputs
    approx_recip = bool(approx_reciprocal)

    kern_none = functools.partial(_none_kernel, beta=beta, eps=eps,
                                  approx_recip=approx_recip)

    # ----------------------------- reduction = 'none' -------------------------
    if reduction == "none":
        if use_flat:
            pred_flat = prediction.reshape(-1)
            tgt_flat = target.reshape(-1)
            block_elems, nb = _pick_block_elems(n, itemsize, n_buffered=3,
                                                max_block_elems=max_block_elems)
            out = pl.pallas_call(
                kern_none,
                out_shape=jax.ShapeDtypeStruct((n,), out_dtype),
                grid_spec=pltpu.PrefetchScalarGridSpec(
                    num_scalar_prefetch=0,
                    grid=(nb,),
                    in_specs=[pl.BlockSpec((block_elems,), lambda i: (i,)),
                              pl.BlockSpec((block_elems,), lambda i: (i,))],
                    out_specs=pl.BlockSpec((block_elems,), lambda i: (i,)),
                ),
                compiler_params=pltpu.CompilerParams(
                    dimension_semantics=("parallel",),
                    vmem_limit_bytes=vmem_limit),
            )(pred_flat, tgt_flat)
            return out.reshape(orig_shape)

        rows = pl.cdiv(n, _LANE)
        block_rows, nb = _pick_block_rows(rows, itemsize, n_buffered=3,
                                          max_block_elems=max_block_elems)
        pred_slab = _as_slab(prediction, rows)
        tgt_slab = _as_slab(target, rows)
        out = pl.pallas_call(
            kern_none,
            out_shape=jax.ShapeDtypeStruct((rows, _LANE), out_dtype),
            grid_spec=pltpu.PrefetchScalarGridSpec(
                num_scalar_prefetch=0,
                grid=(nb,),
                in_specs=[pl.BlockSpec((block_rows, _LANE), lambda i: (i, 0)),
                          pl.BlockSpec((block_rows, _LANE), lambda i: (i, 0))],
                out_specs=pl.BlockSpec((block_rows, _LANE), lambda i: (i, 0)),
            ),
            compiler_params=pltpu.CompilerParams(
                dimension_semantics=("parallel",),
                vmem_limit_bytes=vmem_limit),
        )(pred_slab, tgt_slab)
        if ragged:
            out = out.reshape(-1)[:n]            # only the tiny (n < 1024) fallback
        return out.reshape(orig_shape)

    # ----------------------------- 'mean' / 'sum' -----------------------------
    if use_flat:
        pred_flat = prediction.reshape(-1)
        tgt_flat = target.reshape(-1)
        block_elems, nb = _pick_block_elems(n, itemsize, n_buffered=4,
                                            max_block_elems=max_block_elems)
        valid_in_last = n - (nb - 1) * block_elems
        splits = _pick_splits(nb)
        bps = pl.cdiv(nb, splits)
        iota = jnp.arange(block_elems, dtype=jnp.int32)

        if splits == 1:
            def in_map(s, k):
                return (k,)
        else:
            def in_map(s, k):
                # Clamp so padding blocks of the split grid re-read a valid block;
                # the kernel skips their accumulation.
                return (jnp.minimum(s * bps + k, nb - 1),)

        partials = pl.pallas_call(
            functools.partial(_sum_kernel_flat, beta=beta, eps=eps, nb=nb, bps=bps,
                              block_elems=block_elems, valid_in_last=valid_in_last,
                              approx_recip=approx_recip),
            out_shape=jax.ShapeDtypeStruct((splits * block_elems,), jnp.float32),
            grid_spec=pltpu.PrefetchScalarGridSpec(
                num_scalar_prefetch=0,
                grid=(splits, bps),
                in_specs=[pl.BlockSpec((block_elems,), lambda s, k: (0,)),   # iota
                          pl.BlockSpec((block_elems,), in_map),
                          pl.BlockSpec((block_elems,), in_map)],
                out_specs=pl.BlockSpec((block_elems,), lambda s, k: (s,)),
            ),
            compiler_params=pltpu.CompilerParams(
                dimension_semantics=("parallel", "arbitrary"),
                vmem_limit_bytes=vmem_limit),
        )(iota, pred_flat, tgt_flat)
        total = jnp.sum(partials)                # tiny final cross-lane reduce
    else:
        rows = pl.cdiv(n, _LANE)
        lane_pad = rows * _LANE - n
        if lane_pad and eps <= 0.0:
            # Zero-padded lane tail contributes 0 only when eps > 0 (spec requires it).
            raise ValueError("eps must be strictly positive")
        block_rows, nb = _pick_block_rows(rows, itemsize, n_buffered=2,
                                          max_block_elems=max_block_elems)
        rows_in_last = rows - (nb - 1) * block_rows
        splits = _pick_splits(nb)
        bps = pl.cdiv(nb, splits)
        pred_slab = _as_slab(prediction, rows)
        tgt_slab = _as_slab(target, rows)

        if splits == 1:
            def in_map(s, k):
                return (k, 0)
        else:
            def in_map(s, k):
                return (jnp.minimum(s * bps + k, nb - 1), 0)

        partials = pl.pallas_call(
            functools.partial(_sum_kernel_slab, beta=beta, eps=eps, nb=nb, bps=bps,
                              block_rows=block_rows, rows_in_last=rows_in_last,
                              approx_recip=approx_recip),
            out_shape=jax.ShapeDtypeStruct((splits * _SUB, _LANE), jnp.float32),
            grid_spec=pltpu.PrefetchScalarGridSpec(
                num_scalar_prefetch=0,
                grid=(splits, bps),
                in_specs=[pl.BlockSpec((block_rows, _LANE), in_map),
                          pl.BlockSpec((block_rows, _LANE), in_map)],
                out_specs=pl.BlockSpec((_SUB, _LANE), lambda s, k: (s, 0)),
            ),
            compiler_params=pltpu.CompilerParams(
                dimension_semantics=("parallel", "arbitrary"),
                vmem_limit_bytes=vmem_limit),
        )(pred_slab, tgt_slab)
        total = jnp.sum(partials)

    if reduction == "mean":
        total = total / jnp.float32(n)
    return total.astype(out_dtype)


class SymmetricRelativeSmoothL1Loss:
    """JAX/Pallas port of gravitorch.nn.SymmetricRelativeSmoothL1Loss (forward).

    No learnable parameters; only reduction/beta/eps hyperparameters.
    """

    def __init__(self, reduction: str = "mean", beta: float = 1.0, eps: float = 1e-8):
        self.reduction = str(reduction)
        self._beta = float(beta)
        self._eps = float(eps)

    def extra_repr(self) -> str:
        return f"reduction={self.reduction}, beta={self._beta}, eps={self._eps}"

    def __call__(self, prediction, target):
        return symmetric_relative_smooth_l1_loss(
            prediction, target,
            reduction=self.reduction, beta=self._beta, eps=self._eps)


def _reference(prediction, target, reduction="mean", beta=1.0, eps=1e-8):
    p = prediction.astype(jnp.float32)
    t = target.astype(jnp.float32)
    loss = _elem_loss(p, t, beta=beta, eps=eps)
    if reduction == "mean":
        return jnp.mean(loss)
    if reduction == "sum":
        return jnp.sum(loss)
    return loss


if __name__ == "__main__":
    key = jax.random.PRNGKey(0)
    k1, k2, k3, k4 = jax.random.split(key, 4)

    # Primary example: batch=2, channels=4, 16x16 spatial (n % 128 == 0 ->
    # zero-copy slab view, single block).
    pred = jax.random.normal(k1, (2, 4, 16, 16), dtype=jnp.float32)
    tgt = jax.random.normal(k2, (2, 4, 16, 16), dtype=jnp.float32)

    criterion = SymmetricRelativeSmoothL1Loss()          # reduction='mean'
    loss = jax.block_until_ready(criterion(pred, tgt))
    loss_sum = jax.block_until_ready(
        symmetric_relative_smooth_l1_loss(pred, tgt, reduction="sum"))
    loss_none = jax.block_until_ready(
        symmetric_relative_smooth_l1_loss(pred, tgt, reduction="none"))

    assert jnp.allclose(loss, _reference(pred, tgt, "mean"), rtol=1e-5, atol=1e-6)
    assert jnp.allclose(loss_sum, _reference(pred, tgt, "sum"), rtol=1e-4, atol=1e-3)
    assert loss_none.shape == pred.shape and loss_none.dtype == pred.dtype
    assert jnp.allclose(loss_none, _reference(pred, tgt, "none"), rtol=1e-5, atol=1e-6)

    # Optional approx-reciprocal path (EUP): looser tolerance (~2^-12 rel. error).
    loss_ar = jax.block_until_ready(
        symmetric_relative_smooth_l1_loss(pred, tgt, approx_reciprocal=True))
    assert jnp.allclose(loss_ar, _reference(pred, tgt, "mean"), rtol=2e-3, atol=2e-3)

    # Docstring-style (3, 5) shape: tiny ragged input -> padded slab fallback.
    p2 = jax.random.normal(k3, (3, 5), dtype=jnp.float32)
    t2 = jax.random.normal(k4, (3, 5), dtype=jnp.float32)
    m2 = jax.block_until_ready(symmetric_relative_smooth_l1_loss(p2, t2))
    n2 = jax.block_until_ready(
        symmetric_relative_smooth_l1_loss(p2, t2, reduction="none"))
    assert jnp.allclose(m2, _reference(p2, t2, "mean"), rtol=1e-5, atol=1e-6)
    assert jnp.allclose(n2, _reference(p2, t2, "none"), rtol=1e-5, atol=1e-6)

    # Ragged n >= 1024: zero-copy flat path.  Forced small blocks exercise the
    # multi-block grid, the last-block tail mask and the split/index-map clamp.
    p3 = jax.random.normal(k1, (7, 706), dtype=jnp.float32)     # n = 4942
    t3 = jax.random.normal(k2, (7, 706), dtype=jnp.float32)
    m3 = jax.block_until_ready(
        symmetric_relative_smooth_l1_loss(p3, t3, max_block_elems=1024))
    s3 = jax.block_until_ready(
        symmetric_relative_smooth_l1_loss(p3, t3, reduction="sum",
                                          max_block_elems=1024))
    n3 = jax.block_until_ready(
        symmetric_relative_smooth_l1_loss(p3, t3, reduction="none",
                                          max_block_elems=1024))
    m3d = jax.block_until_ready(symmetric_relative_smooth_l1_loss(p3, t3))
    assert jnp.allclose(m3, _reference(p3, t3, "mean"), rtol=1e-4, atol=1e-6)
    assert jnp.allclose(s3, _reference(p3, t3, "sum"), rtol=1e-4, atol=1e-3)
    assert jnp.allclose(n3, _reference(p3, t3, "none"), rtol=1e-5, atol=1e-6)
    assert jnp.allclose(m3d, _reference(p3, t3, "mean"), rtol=1e-4, atol=1e-6)

    # Divisible multi-block slab path with a partial last row-block: exercises
    # the unmasked/masked pl.when split and the reduction grid split.
    p4 = jax.random.normal(k3, (17, 1024), dtype=jnp.float32)   # rows = 136
    t4 = jax.random.normal(k4, (17, 1024), dtype=jnp.float32)
    m4 = jax.block_until_ready(
        symmetric_relative_smooth_l1_loss(p4, t4, max_block_elems=16 * 128))
    s4 = jax.block_until_ready(
        symmetric_relative_smooth_l1_loss(p4, t4, reduction="sum",
                                          max_block_elems=16 * 128))
    n4 = jax.block_until_ready(
        symmetric_relative_smooth_l1_loss(p4, t4, reduction="none",
                                          max_block_elems=16 * 128))
    assert jnp.allclose(m4, _reference(p4, t4, "mean"), rtol=1e-4, atol=1e-6)
    assert jnp.allclose(s4, _reference(p4, t4, "sum"), rtol=1e-4, atol=1e-2)
    assert jnp.allclose(n4, _reference(p4, t4, "none"), rtol=1e-5, atol=1e-6)

    # bf16 inputs: reductions accumulate in f32; 'mean' returned in bf16.
    pb = pred.astype(jnp.bfloat16)
    tb = tgt.astype(jnp.bfloat16)
    mb = jax.block_until_ready(symmetric_relative_smooth_l1_loss(pb, tb))
    assert jnp.allclose(mb.astype(jnp.float32), _reference(pb, tb, "mean"),
                        rtol=2e-2, atol=2e-2)

    # TODO(synk): backward pass (torch autograd) not implemented; forward only.
    print("KERNEL_OK")
</pallas_src>

<mosaic_0001>
module attributes {stable_mosaic.version = 11 : i64} {
  func.func @_sum_kernel_slab(%arg0: i32, %arg1: i32, %arg2: memref<16x128xf32, #tpu.memory_space<vmem>>, %arg3: memref<16x128xf32, #tpu.memory_space<vmem>>, %arg4: memref<8x128xf32, #tpu.memory_space<vmem>>) attributes {dimension_semantics = [#tpu.dimension_semantics<parallel>, #tpu.dimension_semantics<arbitrary>], iteration_bounds = array<i64: 1, 1>, scalar_prefetch = 0 : i64, scratch_operands = 0 : i64, tpu.core_type = #tpu.core_type<tc>, window_params = [{transform_indices = @transform_0, window_bounds = array<i64: 16, 128>}, {transform_indices = @transform_1, window_bounds = array<i64: 16, 128>}, {transform_indices = @transform_2, window_bounds = array<i64: 8, 128>}]} {
    %c1_i32 = arith.constant 1 : i32
    %0 = arith.muli %arg0, %c1_i32 : i32
    %1 = arith.addi %0, %arg1 : i32
    %c0_i32 = arith.constant 0 : i32
    %2 = arith.cmpi eq, %arg1, %c0_i32 : i32
    %3 = arith.extui %2 : i1 to i32
    %c0_i32_0 = arith.constant 0 : i32
    %4 = arith.cmpi ne, %3, %c0_i32_0 : i32
    scf.if %4 {
      %cst = arith.constant 0.000000e+00 : f32
      %8 = vector.broadcast %cst : f32 to vector<8x128xf32>
      %c0 = arith.constant 0 : index
      %c0_3 = arith.constant 0 : index
      %9 = vector.load %arg4[%c0, %c0_3] : memref<8x128xf32, #tpu.memory_space<vmem>>, vector<8x128xf32>
      tpu.vector_store %arg4[%c0, %c0_3], %8 {strides = array<i32>} : memref<8x128xf32, #tpu.memory_space<vmem>>, vector<8x128xf32>,
    } else {
    }
    %c1_i32_1 = arith.constant 1 : i32
    %5 = arith.cmpi slt, %1, %c1_i32_1 : i32
    %6 = arith.extui %5 : i1 to i32
    %c0_i32_2 = arith.constant 0 : i32
    %7 = arith.cmpi ne, %6, %c0_i32_2 : i32
    scf.if %7 {
      %c0 = arith.constant 0 : index
      %c0_3 = arith.constant 0 : index
      %8 = vector.load %arg2[%c0, %c0_3] : memref<16x128xf32, #tpu.memory_space<vmem>>, vector<16x128xf32>
      %c0_4 = arith.constant 0 : index
      %c0_5 = arith.constant 0 : index
      %9 = vector.load %arg3[%c0_4, %c0_5] : memref<16x128xf32, #tpu.memory_space<vmem>>, vector<16x128xf32>
      %10 = arith.subf %8, %9 : vector<16x128xf32>
      %11 = math.absf %10 : vector<16x128xf32>
      %cst = arith.constant 5.000000e-01 : f32
      %12 = vector.broadcast %cst : f32 to vector<16x128xf32>
      %13 = arith.mulf %12, %10 : vector<16x128xf32>
      %14 = arith.mulf %13, %10 : vector<16x128xf32>
      %cst_6 = arith.constant 5.000000e-01 : f32
      %15 = vector.broadcast %cst_6 : f32 to vector<16x128xf32>
      %16 = arith.subf %11, %15 : vector<16x128xf32>
      %cst_7 = arith.constant 1.000000e+00 : f32
      %17 = vector.broadcast %cst_7 : f32 to vector<16x128xf32>
      %18 = arith.cmpf olt, %11, %17 : vector<16x128xf32>
      %19 = arith.select %18, %14, %16 : vector<16x128xi1>, vector<16x128xf32>
      %20 = math.absf %8 : vector<16x128xf32>
      %21 = math.absf %9 : vector<16x128xf32>
      %22 = arith.maximumf %20, %21 : vector<16x128xf32>
      %cst_8 = arith.constant 9.99999993E-9 : f32
      %23 = vector.broadcast %cst_8 : f32 to vector<16x128xf32>
      %24 = arith.maximumf %22, %23 : vector<16x128xf32>
      %25 = arith.divf %19, %24 : vector<16x128xf32>
      %c0_9 = arith.constant 0 : index
      %c0_10 = arith.constant 0 : index
      %26 = vector.load %arg4[%c0_9, %c0_10] : memref<8x128xf32, #tpu.memory_space<vmem>>, vector<8x128xf32>
      %27 = vector.shape_cast %25 : vector<16x128xf32> to vector<2x8x128xf32>
      %cst_11 = arith.constant dense<0.000000e+00> : vector<8x128xf32>
      %28 = vector.multi_reduction <add>, %27, %cst_11 [0] : vector<2x8x128xf32> to vector<8x128xf32>
      %29 = arith.addf %26, %28 : vector<8x128xf32>
      %c0_12 = arith.constant 0 : index
      %c0_13 = arith.constant 0 : index
      %30 = vector.load %arg4[%c0_12, %c0_13] : memref<8x128xf32, #tpu.memory_space<vmem>>, vector<8x128xf32>
      tpu.vector_store %arg4[%c0_12, %c0_13], %29 {strides = array<i32>} : memref<8x128xf32, #tpu.memory_space<vmem>>, vector<8x128xf32>,
    } else {
    }
    return
  }
  func.func @transform_0(%arg0: i32, %arg1: i32) -> (i32, i32) {
    %c0_i32 = arith.constant 0 : i32
    %c0_i32_0 = arith.constant 0 : i32
    return %arg1, %c0_i32 : i32, i32
  }
  func.func @transform_1(%arg0: i32, %arg1: i32) -> (i32, i32) {
    %c0_i32 = arith.constant 0 : i32
    %c0_i32_0 = arith.constant 0 : i32
    return %arg1, %c0_i32 : i32, i32
  }
  func.func @transform_2(%arg0: i32, %arg1: i32) -> (i32, i32) {
    %c0_i32 = arith.constant 0 : i32
    %c0_i32_0 = arith.constant 0 : i32
    return %arg0, %c0_i32 : i32, i32
  }
}

</mosaic_0001>

<llo_original>
// kernel: tpu_custom_call.1
$region0: #{tpu_custom_call.1}
  #allocation0 [shape = 'u32[]', space=smem, size = 0x4, offset = 0x4, fixed_abs, tag = 'smem constant byte address 0x4 - core index']
  #allocation1 [shape = 'u32[144,128]{1,0:T(1,128)}', space=vmem, size = 0x12000, scoped, tag = 'internal scratch']
  %s0 = inlined_call_operand.hbm [shape: f32[16,128], index: 0, kind: input, shape index: {}]
  %s1 = inlined_call_operand.hbm [shape: f32[16,128], index: 1, kind: input, shape index: {}]
  %s2 = inlined_call_operand.hbm [shape: f32[8,128], index: 2, kind: output, shape index: {}]
  %s3 = sld [smem:[#allocation0]]
  $region34: #{tpu_custom_call.1} parent=0
    _
  %s5 = ssub.s32 1, %s3
  %s6 = scalar_select 0, %s5, %s3
  $region1: #{tpu_custom_call.1} parent=0
    #allocation2 [shape = 'u8[8192]{0}', space=vmem, size = 0x2000, scoped, tag = 'input window, operand 0, single buffered']
    #allocation3 [shape = 's32[1]{0}', space=sflag, size = 0x4, scoped, tag = 'scoped memory for tpu_custom_call.1']
    #allocation4 [shape = 's32[1]{0}', space=sflag, size = 0x4, scoped, tag = 'scoped memory for tpu_custom_call.1']
    #allocation5 [shape = 'u8[8192]{0}', space=vmem, size = 0x2000, scoped, tag = 'input window, operand 1, single buffered']
    #allocation6 [shape = 's32[1]{0}', space=sflag, size = 0x4, scoped, tag = 'scoped memory for tpu_custom_call.1']
    #allocation7 [shape = 'u8[4096]{0}', space=vmem, size = 0x1000, scoped, tag = 'output window, operand 0, single buffered']
    %7 = vsyncpa [#allocation3], 0
    %8 = vsyncpa [#allocation6], 0
    %9 = vsyncpa [#allocation4], 0
    // Predicated region
    $region2: #{tpu_custom_call.1} parent=1 // pred_check
      _
    $region3: #{tpu_custom_call.1} parent=1 // pred_check_branch
      %11 = sbr.rel (0) target = $region5
    $region4: #{tpu_custom_call.1} parent=1 // pred_region
      %s13 = ssub.s32 256, 256
      %14 = vsyncadd [#allocation3], %s13
      %s15 = sshll.u32 [#allocation2], 4
      %s16 = int_to_ptr.vmem [resolvable:$true] %s15
      %21 = dma.hbm_to_vmem [thread:$0]  %s0, 256, %s16, [#allocation3], 128, 128, 8
    $region5: #{tpu_custom_call.1} parent=1 // pred_fallthru
      _
    // Predicated region
    $region6: #{tpu_custom_call.1} parent=1 // pred_check
      _
    $region7: #{tpu_custom_call.1} parent=1 // pred_check_branch
      %23 = sbr.rel (0) target = $region9
    $region8: #{tpu_custom_call.1} parent=1 // pred_region
      %s25 = ssub.s32 256, 256
      %26 = vsyncadd [#allocation6], %s25
      %s27 = sshll.u32 [#allocation5], 4
      %s28 = int_to_ptr.vmem [resolvable:$true] %s27
      %33 = dma.hbm_to_vmem [thread:$0]  %s1, 256, %s28, [#allocation6], 128, 128, 8
    $region9: #{tpu_custom_call.1} parent=1 // pred_fallthru
      _
    // Predicated region
    $region10: #{tpu_custom_call.1} parent=1 // pred_check
      _
    $region11: #{tpu_custom_call.1} parent=1 // pred_check_branch
      %35 = sbr.rel (0) target = $region13
    $region12: #{tpu_custom_call.1} parent=1 // pred_region
      %36 = dma.done [#allocation3], 256
    $region13: #{tpu_custom_call.1} parent=1 // pred_fallthru
      _
    // Predicated region
    $region14: #{tpu_custom_call.1} parent=1 // pred_check
      _
    $region15: #{tpu_custom_call.1} parent=1 // pred_check_branch
      %38 = sbr.rel (0) target = $region17
    $region16: #{tpu_custom_call.1} parent=1 // pred_region
      %39 = dma.done [#allocation6], 256
    $region17: #{tpu_custom_call.1} parent=1 // pred_fallthru
      _
    %s40 = sadd.s32 0, 0
    %p41 = scmp.eq.s32.totalorder 0, 0
    // Predicated region
    $region18: #{tpu_custom_call.1} parent=1 // pred_check
      %p42 = pneg %p41
    $region19: #{tpu_custom_call.1} parent=1 // pred_check_branch
      %44 = sbr.rel (%p42) target = $region21
    $region20: #{tpu_custom_call.1} parent=1 // pred_region
      %45 = vst [vmem:[#allocation7] sm:$0xff] 0.0
    $region21: #{tpu_custom_call.1} parent=1 // pred_fallthru
      _
    %p46 = scmp.lt.s32.totalorder %s40, 1
    // Predicated region
    $region22: #{tpu_custom_call.1} parent=1 // pred_check
      %p47 = pneg %p46
    $region23: #{tpu_custom_call.1} parent=1 // pred_check_branch
      %49 = sbr.rel (%p47) target = $region25
    $region24: #{tpu_custom_call.1} parent=1 // pred_region
      %v50 = vld [vmem:[#allocation2] sm:$0xff]
      %v51 = vld [vmem:[#allocation2 + $0x8] sm:$0xff]
      %v52 = vld [vmem:[#allocation5] sm:$0xff]
      %v53 = vld [vmem:[#allocation5 + $0x8] sm:$0xff]
      %v54 = vsub.f32 %v50, %v52
      %v55 = vsub.f32 %v51, %v53
      %v56 = vand.u32 2147483647, %v54
      %v57 = vand.u32 2147483647, %v55
      %v58 = vmul.f32 %v54, 0.5
      %v59 = vmul.f32 %v55, 0.5
      %v60 = vmul.f32 %v58, %v54
      %v61 = vmul.f32 %v59, %v55
      %v62 = vsub.f32 %v56, 0.5
      %v63 = vsub.f32 %v57, 0.5
      %vm64 = vcmp.lt.f32.partialorder %v56, 1.0
      %vm65 = vcmp.lt.f32.partialorder %v57, 1.0
      %v66 = vsel %vm64, %v60, %v62
      %v67 = vsel %vm65, %v61, %v63
      %v68 = vand.u32 2147483647, %v50
      %v69 = vand.u32 2147483647, %v51
      %v70 = vand.u32 2147483647, %v52
      %v71 = vand.u32 2147483647, %v53
      %v72 = vmax.f32 %v68, %v70
      %v73 = vmax.f32 %v69, %v71
      %v74 = vmax.f32 %v72, 1e-08
      %v75 = vmax.f32 %v73, 1e-08
      %v76 = vrcp.pop %v74
      %v77 = vmul.f32 %v66, %v76
      %v78 = vrcp.pop %v75
      %v79 = vmul.f32 %v67, %v78
      %v80 = vld [vmem:[#allocation7] sm:$0xff]
      %v81 = vadd.f32 %v77, %v79
      %v82 = vadd.f32 %v80, %v81
      %83 = vst [vmem:[#allocation7] sm:$0xff] %v82
    $region25: #{tpu_custom_call.1} parent=1 // pred_fallthru
      _
    // Predicated region
    $region26: #{tpu_custom_call.1} parent=1 // pred_check
      _
    $region27: #{tpu_custom_call.1} parent=1 // pred_check_branch
      %85 = sbr.rel (0) target = $region29
    $region28: #{tpu_custom_call.1} parent=1 // pred_region
      %s87 = ssub.s32 128, 128
      %88 = vsyncadd [#allocation4], %s87
      %s90 = sshll.u32 [#allocation7], 4
      %s91 = int_to_ptr.vmem [resolvable:$true] %s90
      %93 = dma.vmem_to_hbm [thread:$0]  %s91, 128, %s2, [#allocation4]
    $region29: #{tpu_custom_call.1} parent=1 // pred_fallthru
      _
    // Predicated region
    $region30: #{tpu_custom_call.1} parent=1 // pred_check
      _
    $region31: #{tpu_custom_call.1} parent=1 // pred_check_branch
      %95 = sbr.rel (0) target = $region33
    $region32: #{tpu_custom_call.1} parent=1 // pred_region
      %96 = dma.done [#allocation4], 128
    $region33: #{tpu_custom_call.1} parent=1 // pred_fallthru
      _
    %97 = vsyncpa [#allocation3], 1
    %98 = vsyncpa [#allocation6], 1
    %99 = vsyncpa [#allocation4], 1

</llo_original>
